<compile_context>
chip_gen: v7x
topology: tpu7x:2x2x1
jax: 0.10.0
libtpu: 0.0.40
codegen_flags: <defaults>
</compile_context>

<pallas_src>
import functools

import jax
import jax.numpy as jnp
from jax.experimental import pallas as pl
from jax.experimental.pallas import tpu as pltpu


def _round_up(x, m):
    return ((x + m - 1) // m) * m


def _pad2d(a, rows, cols):
    pr, pc = rows - a.shape[0], cols - a.shape[1]
    if pr or pc:
        a = jnp.pad(a, ((0, pr), (0, pc)))
    return a


def _ffn_kernel(x_ref, w1_ref, b1_ref, w2_ref, b2_ref, g_ref, beta_ref,
                o_ref, acc_ref, *, eps, d_model, d_model_pad):
    """Grid = (row_tiles, f_chunks).  acc_ref accumulates linear2 output."""
    f = pl.program_id(1)

    @pl.when(f == 0)
    def _():
        acc_ref[...] = jnp.zeros_like(acc_ref)

    # linear1 chunk + relu (dropout p=0.0 is identity).  Feed the MXU in the
    # weights' dtype (bf16 on v6e/v7x), accumulate in f32.
    x = x_ref[...]
    if x.dtype != w1_ref.dtype:
        x = x.astype(w1_ref.dtype)
    h = jnp.dot(x, w1_ref[...], preferred_element_type=jnp.float32)   # (TM, TF)
    h = jnp.maximum(h + b1_ref[...], 0.0)                             # b1 is f32

    # linear2 chunk, accumulated into VMEM f32 scratch.
    acc_ref[...] += jnp.dot(h.astype(w2_ref.dtype), w2_ref[...],
                            preferred_element_type=jnp.float32)       # (TM, D)

    # Epilogue on the last feedforward chunk: bias, residual, LayerNorm.
    @pl.when(f == pl.num_programs(1) - 1)
    def _():
        z = x_ref[...].astype(jnp.float32) + acc_ref[...] + b2_ref[...]
        # Padded d_model columns of x / acc / b2 are exactly zero, so the sum
        # over the padded width equals the sum over the true width.
        inv_d = jnp.float32(1.0 / d_model)
        mean = jnp.sum(z, axis=-1, keepdims=True) * inv_d
        zc = z - mean
        if d_model_pad != d_model:
            col = jax.lax.broadcasted_iota(jnp.int32, zc.shape, dimension=1)
            zc_m = jnp.where(col < d_model, zc, 0.0)
        else:
            zc_m = zc
        var = jnp.sum(zc_m * zc_m, axis=-1, keepdims=True) * inv_d
        inv = jax.lax.rsqrt(var + eps)
        out = zc * inv * g_ref[...] + beta_ref[...]    # padded cols: gamma=beta=0
        o_ref[...] = out.astype(o_ref.dtype)


def ffn_layer(tgt, w1, b1, w2, b2, gamma, beta, *, eps=1e-5,
              row_tile=256, f_tile=512):
    """FFNLayer.forward_post.

    tgt:   (seq, batch, d_model)
    w1:    (d_model, dim_feedforward)   (transposed vs. torch Linear.weight)
    b1:    (dim_feedforward,)
    w2:    (dim_feedforward, d_model)
    b2, gamma, beta: (d_model,)

    Pass w1/w2 as bfloat16 for the fast MXU path on v6e/v7x; the epilogue
    (residual + LayerNorm) is always computed in float32.
    """
    seq, bsz, d_model = tgt.shape
    dff = w1.shape[1]
    n_rows = seq * bsz

    # Tile / padding sizes (lane-dense output, (8,128)-aligned blocks).
    d_pad = _round_up(d_model, 128)
    row_tile = min(row_tile, _round_up(n_rows, 8))
    n_rows_pad = _round_up(n_rows, row_tile)
    f_tile = min(f_tile, _round_up(dff, 128))
    dff_pad = _round_up(dff, f_tile)

    x2d = _pad2d(tgt.reshape(n_rows, d_model), n_rows_pad, d_pad)

    # Pad parameters once in the wrapper; vector params go in as f32 so the
    # kernel never re-casts them per grid step.
    w1p = _pad2d(w1, d_pad, dff_pad)
    w2p = _pad2d(w2, dff_pad, d_pad)
    b1p = _pad2d(b1.reshape(1, dff).astype(jnp.float32), 1, dff_pad)
    b2p = _pad2d(b2.reshape(1, d_model).astype(jnp.float32), 1, d_pad)
    gp = _pad2d(gamma.reshape(1, d_model).astype(jnp.float32), 1, d_pad)
    bp = _pad2d(beta.reshape(1, d_model).astype(jnp.float32), 1, d_pad)

    grid = (n_rows_pad // row_tile, dff_pad // f_tile)
    kernel = functools.partial(_ffn_kernel, eps=eps, d_model=d_model,
                               d_model_pad=d_pad)

    # Per-step VMEM (double-buffered blocks + f32 accumulator) stays well under
    # the default scoped limit for the default tiles; raise
    # pltpu.CompilerParams(vmem_limit_bytes=...) only if row_tile/f_tile grow.
    out = pl.pallas_call(
        kernel,
        out_shape=jax.ShapeDtypeStruct((n_rows_pad, d_pad), tgt.dtype),
        grid_spec=pltpu.PrefetchScalarGridSpec(
            num_scalar_prefetch=0,
            grid=grid,
            in_specs=[
                pl.BlockSpec((row_tile, d_pad), lambda i, f: (i, 0)),  # x rows
                pl.BlockSpec((d_pad, f_tile), lambda i, f: (0, f)),    # W1 chunk
                pl.BlockSpec((1, f_tile), lambda i, f: (0, f)),        # b1 chunk
                pl.BlockSpec((f_tile, d_pad), lambda i, f: (f, 0)),    # W2 chunk
                pl.BlockSpec((1, d_pad), lambda i, f: (0, 0)),         # b2
                pl.BlockSpec((1, d_pad), lambda i, f: (0, 0)),         # gamma
                pl.BlockSpec((1, d_pad), lambda i, f: (0, 0)),         # beta
            ],
            out_specs=pl.BlockSpec((row_tile, d_pad), lambda i, f: (i, 0)),
            scratch_shapes=[pltpu.VMEM((row_tile, d_pad), jnp.float32)],
        ),
        compiler_params=pltpu.CompilerParams(
            dimension_semantics=("parallel", "arbitrary")),
    )(x2d, w1p, b1p, w2p, b2p, gp, bp)

    return out[:n_rows, :d_model].reshape(seq, bsz, d_model)


def _ffn_reference(tgt, w1, b1, w2, b2, gamma, beta, eps=1e-5):
    f32 = jnp.float32
    x = tgt.astype(f32)
    h = jnp.maximum(x @ w1.astype(f32) + b1.astype(f32), 0.0)
    y = h @ w2.astype(f32) + b2.astype(f32)
    z = x + y
    mu = z.mean(-1, keepdims=True)
    var = ((z - mu) ** 2).mean(-1, keepdims=True)
    return (z - mu) * jax.lax.rsqrt(var + eps) * gamma.astype(f32) \
        + beta.astype(f32)


def _xavier_uniform(key, fan_in, fan_out, dtype=jnp.float32):
    limit = (6.0 / (fan_in + fan_out)) ** 0.5
    return jax.random.uniform(key, (fan_in, fan_out), dtype, -limit, limit)


def _make_params(key, d_model, dff):
    k_w1, k_b1, k_w2, k_b2 = jax.random.split(key, 4)
    w1 = _xavier_uniform(k_w1, d_model, dff)
    b1 = jax.random.uniform(k_b1, (dff,), jnp.float32, -0.05, 0.05)
    w2 = _xavier_uniform(k_w2, dff, d_model)
    b2 = jax.random.uniform(k_b2, (d_model,), jnp.float32, -0.05, 0.05)
    gamma = jnp.ones((d_model,), jnp.float32)
    beta = jnp.zeros((d_model,), jnp.float32)
    return w1, b1, w2, b2, gamma, beta


if __name__ == "__main__":
    key = jax.random.PRNGKey(0)

    # --- Test 1: small module-consistent shapes, f32 weights, strict check ---
    seq, bsz, d_model, dff = 8, 2, 32, 64
    k_x, k_p, key = jax.random.split(key, 3)
    tgt = jax.random.normal(k_x, (seq, bsz, d_model), jnp.float32)
    params = _make_params(k_p, d_model, dff)

    out = jax.block_until_ready(ffn_layer(tgt, *params))
    ref = _ffn_reference(tgt, *params)
    assert out.shape == (seq, bsz, d_model)
    assert jnp.allclose(out, ref, atol=1e-5, rtol=1e-5), "f32 mismatch (test 1)"

    # --- Test 2: realistic shape, bf16 weights (MXU fast path), F-chunked ---
    seq, bsz, d_model, dff = 100, 2, 256, 1024
    k_x, k_p, key = jax.random.split(key, 3)
    tgt = jax.random.normal(k_x, (seq, bsz, d_model), jnp.float32)
    w1, b1, w2, b2, gamma, beta = _make_params(k_p, d_model, dff)
    w1_bf, w2_bf = w1.astype(jnp.bfloat16), w2.astype(jnp.bfloat16)

    out = jax.block_until_ready(
        ffn_layer(tgt, w1_bf, b1, w2_bf, b2, gamma, beta, row_tile=128))
    ref = _ffn_reference(tgt, w1_bf, b1, w2_bf, b2, gamma, beta)
    assert out.shape == (seq, bsz, d_model)
    assert jnp.allclose(out, ref, atol=5e-2, rtol=5e-2), "bf16 mismatch (test 2)"

    # --- Test 3: row count not a multiple of the tile (padding path), f32 ---
    seq, bsz, d_model, dff = 5, 3, 32, 64
    k_x, k_p, key = jax.random.split(key, 3)
    tgt = jax.random.normal(k_x, (seq, bsz, d_model), jnp.float32)
    params = _make_params(k_p, d_model, dff)

    out = jax.block_until_ready(ffn_layer(tgt, *params))
    ref = _ffn_reference(tgt, *params)
    assert out.shape == (seq, bsz, d_model)
    assert jnp.allclose(out, ref, atol=1e-5, rtol=1e-5), "f32 mismatch (test 3)"

    print("KERNEL_OK")
</pallas_src>

<mosaic_0001>
module attributes {stable_mosaic.version = 11 : i64} {
  func.func @_ffn_kernel(%arg0: i32, %arg1: i32, %arg2: memref<16x128xf32, #tpu.memory_space<vmem>>, %arg3: memref<128x128xf32, #tpu.memory_space<vmem>>, %arg4: memref<1x128xf32, #tpu.memory_space<vmem>>, %arg5: memref<128x128xf32, #tpu.memory_space<vmem>>, %arg6: memref<1x128xf32, #tpu.memory_space<vmem>>, %arg7: memref<1x128xf32, #tpu.memory_space<vmem>>, %arg8: memref<1x128xf32, #tpu.memory_space<vmem>>, %arg9: memref<16x128xf32, #tpu.memory_space<vmem>>, %arg10: memref<16x128xf32, #tpu.memory_space<vmem>>) attributes {dimension_semantics = [#tpu.dimension_semantics<parallel>, #tpu.dimension_semantics<arbitrary>], iteration_bounds = array<i64: 1, 1>, scalar_prefetch = 0 : i64, scratch_operands = 1 : i64, tpu.core_type = #tpu.core_type<tc>, window_params = [{transform_indices = @transform_0, window_bounds = array<i64: 16, 128>}, {transform_indices = @transform_1, window_bounds = array<i64: 128, 128>}, {transform_indices = @transform_2, window_bounds = array<i64: 1, 128>}, {transform_indices = @transform_3, window_bounds = array<i64: 128, 128>}, {pipeline_mode = #tpu.pipeline_mode<synchronous>, transform_indices = @transform_4, window_bounds = array<i64: 1, 128>}, {pipeline_mode = #tpu.pipeline_mode<synchronous>, transform_indices = @transform_5, window_bounds = array<i64: 1, 128>}, {pipeline_mode = #tpu.pipeline_mode<synchronous>, transform_indices = @transform_6, window_bounds = array<i64: 1, 128>}, {transform_indices = @transform_7, window_bounds = array<i64: 16, 128>}]} {
    %c0_i32 = arith.constant 0 : i32
    %0 = arith.cmpi eq, %arg1, %c0_i32 : i32
    %1 = arith.extui %0 : i1 to i32
    %c0_i32_0 = arith.constant 0 : i32
    %2 = arith.cmpi ne, %1, %c0_i32_0 : i32
    scf.if %2 {
      %cst_16 = arith.constant 0.000000e+00 : f32
      %19 = vector.broadcast %cst_16 : f32 to vector<16x128xf32>
      %c0_17 = arith.constant 0 : index
      %c0_18 = arith.constant 0 : index
      %20 = vector.load %arg10[%c0_17, %c0_18] : memref<16x128xf32, #tpu.memory_space<vmem>>, vector<16x128xf32>
      tpu.vector_store %arg10[%c0_17, %c0_18], %19 {strides = array<i32>} : memref<16x128xf32, #tpu.memory_space<vmem>>, vector<16x128xf32>,
    } else {
    }
    %c0 = arith.constant 0 : index
    %c0_1 = arith.constant 0 : index
    %3 = vector.load %arg2[%c0, %c0_1] : memref<16x128xf32, #tpu.memory_space<vmem>>, vector<16x128xf32>
    %c0_2 = arith.constant 0 : index
    %c0_3 = arith.constant 0 : index
    %4 = vector.load %arg3[%c0_2, %c0_3] : memref<128x128xf32, #tpu.memory_space<vmem>>, vector<128x128xf32>
    %cst = arith.constant dense<0.000000e+00> : vector<16x128xf32>
    %5 = tpu.matmul %3, %4, %cst {dimension_numbers = #tpu.dot_dimension_numbers<[1], [0], [0], [1], [0, 0, 1, 1], [], []>} : vector<16x128xf32>, vector<128x128xf32>, vector<16x128xf32> -> vector<16x128xf32>
    %c0_4 = arith.constant 0 : index
    %c0_5 = arith.constant 0 : index
    %6 = vector.load %arg4[%c0_4, %c0_5] : memref<1x128xf32, #tpu.memory_space<vmem>>, vector<1x128xf32>
    %7 = vector.broadcast %6 : vector<1x128xf32> to vector<16x128xf32>
    %8 = arith.addf %5, %7 : vector<16x128xf32>
    %cst_6 = arith.constant 0.000000e+00 : f32
    %9 = vector.broadcast %cst_6 : f32 to vector<16x128xf32>
    %10 = arith.maximumf %8, %9 : vector<16x128xf32>
    %c0_7 = arith.constant 0 : index
    %c0_8 = arith.constant 0 : index
    %11 = vector.load %arg10[%c0_7, %c0_8] : memref<16x128xf32, #tpu.memory_space<vmem>>, vector<16x128xf32>
    %c0_9 = arith.constant 0 : index
    %c0_10 = arith.constant 0 : index
    %12 = vector.load %arg5[%c0_9, %c0_10] : memref<128x128xf32, #tpu.memory_space<vmem>>, vector<128x128xf32>
    %cst_11 = arith.constant dense<0.000000e+00> : vector<16x128xf32>
    %13 = tpu.matmul %10, %12, %cst_11 {dimension_numbers = #tpu.dot_dimension_numbers<[1], [0], [0], [1], [0, 0, 1, 1], [], []>} : vector<16x128xf32>, vector<128x128xf32>, vector<16x128xf32> -> vector<16x128xf32>
    %14 = arith.addf %11, %13 : vector<16x128xf32>
    %c0_12 = arith.constant 0 : index
    %c0_13 = arith.constant 0 : index
    %15 = vector.load %arg10[%c0_12, %c0_13] : memref<16x128xf32, #tpu.memory_space<vmem>>, vector<16x128xf32>
    tpu.vector_store %arg10[%c0_12, %c0_13], %14 {strides = array<i32>} : memref<16x128xf32, #tpu.memory_space<vmem>>, vector<16x128xf32>,
    %c0_i32_14 = arith.constant 0 : i32
    %16 = arith.cmpi eq, %arg1, %c0_i32_14 : i32
    %17 = arith.extui %16 : i1 to i32
    %c0_i32_15 = arith.constant 0 : i32
    %18 = arith.cmpi ne, %17, %c0_i32_15 : i32
    scf.if %18 {
      %c0_16 = arith.constant 0 : index
      %c0_17 = arith.constant 0 : index
      %19 = vector.load %arg2[%c0_16, %c0_17] : memref<16x128xf32, #tpu.memory_space<vmem>>, vector<16x128xf32>
      %c0_18 = arith.constant 0 : index
      %c0_19 = arith.constant 0 : index
      %20 = vector.load %arg10[%c0_18, %c0_19] : memref<16x128xf32, #tpu.memory_space<vmem>>, vector<16x128xf32>
      %21 = arith.addf %19, %20 : vector<16x128xf32>
      %c0_20 = arith.constant 0 : index
      %c0_21 = arith.constant 0 : index
      %22 = vector.load %arg6[%c0_20, %c0_21] : memref<1x128xf32, #tpu.memory_space<vmem>>, vector<1x128xf32>
      %23 = vector.broadcast %22 : vector<1x128xf32> to vector<16x128xf32>
      %24 = arith.addf %21, %23 : vector<16x128xf32>
      %cst_22 = arith.constant dense<0.000000e+00> : vector<16xf32>
      %25 = vector.multi_reduction <add>, %24, %cst_22 [1] : vector<16x128xf32> to vector<16xf32>
      %26 = vector.shape_cast %25 : vector<16xf32> to vector<16x1xf32>
      %cst_23 = arith.constant 3.125000e-02 : f32
      %27 = vector.broadcast %cst_23 : f32 to vector<16x1xf32>
      %28 = arith.mulf %26, %27 : vector<16x1xf32>
      %29 = vector.broadcast %28 : vector<16x1xf32> to vector<16x128xf32>
      %30 = arith.subf %24, %29 : vector<16x128xf32>
      %31 = tpu.iota {dimensions = array<i32: 1>} : vector<16x128xi32>
      %c32_i32 = arith.constant 32 : i32
      %32 = vector.broadcast %c32_i32 : i32 to vector<16x128xi32>
      %33 = arith.cmpi slt, %31, %32 : vector<16x128xi32>
      %cst_24 = arith.constant 0.000000e+00 : f32
      %34 = vector.broadcast %cst_24 : f32 to vector<16x128xf32>
      %35 = arith.select %33, %30, %34 : vector<16x128xi1>, vector<16x128xf32>
      %36 = arith.mulf %35, %35 : vector<16x128xf32>
      %cst_25 = arith.constant dense<0.000000e+00> : vector<16xf32>
      %37 = vector.multi_reduction <add>, %36, %cst_25 [1] : vector<16x128xf32> to vector<16xf32>
      %38 = vector.shape_cast %37 : vector<16xf32> to vector<16x1xf32>
      %cst_26 = arith.constant 3.125000e-02 : f32
      %39 = vector.broadcast %cst_26 : f32 to vector<16x1xf32>
      %40 = arith.mulf %38, %39 : vector<16x1xf32>
      %cst_27 = arith.constant 9.99999974E-6 : f32
      %41 = vector.broadcast %cst_27 : f32 to vector<16x1xf32>
      %42 = arith.addf %40, %41 : vector<16x1xf32>
      %43 = math.rsqrt %42 : vector<16x1xf32>
      %44 = vector.broadcast %43 : vector<16x1xf32> to vector<16x128xf32>
      %45 = arith.mulf %30, %44 : vector<16x128xf32>
      %c0_28 = arith.constant 0 : index
      %c0_29 = arith.constant 0 : index
      %46 = vector.load %arg7[%c0_28, %c0_29] : memref<1x128xf32, #tpu.memory_space<vmem>>, vector<1x128xf32>
      %47 = vector.broadcast %46 : vector<1x128xf32> to vector<16x128xf32>
      %48 = arith.mulf %45, %47 : vector<16x128xf32>
      %c0_30 = arith.constant 0 : index
      %c0_31 = arith.constant 0 : index
      %49 = vector.load %arg8[%c0_30, %c0_31] : memref<1x128xf32, #tpu.memory_space<vmem>>, vector<1x128xf32>
      %50 = vector.broadcast %49 : vector<1x128xf32> to vector<16x128xf32>
      %51 = arith.addf %48, %50 : vector<16x128xf32>
      %c0_32 = arith.constant 0 : index
      %c0_33 = arith.constant 0 : index
      %52 = vector.load %arg9[%c0_32, %c0_33] : memref<16x128xf32, #tpu.memory_space<vmem>>, vector<16x128xf32>
      tpu.vector_store %arg9[%c0_32, %c0_33], %51 {strides = array<i32>} : memref<16x128xf32, #tpu.memory_space<vmem>>, vector<16x128xf32>,
    } else {
    }
    return
  }
  func.func @transform_0(%arg0: i32, %arg1: i32) -> (i32, i32) {
    %c0_i32 = arith.constant 0 : i32
    %c0_i32_0 = arith.constant 0 : i32
    return %arg0, %c0_i32 : i32, i32
  }
  func.func @transform_1(%arg0: i32, %arg1: i32) -> (i32, i32) {
    %c0_i32 = arith.constant 0 : i32
    %c0_i32_0 = arith.constant 0 : i32
    return %c0_i32, %arg1 : i32, i32
  }
  func.func @transform_2(%arg0: i32, %arg1: i32) -> (i32, i32) {
    %c0_i32 = arith.constant 0 : i32
    %c0_i32_0 = arith.constant 0 : i32
    return %c0_i32, %arg1 : i32, i32
  }
  func.func @transform_3(%arg0: i32, %arg1: i32) -> (i32, i32) {
    %c0_i32 = arith.constant 0 : i32
    %c0_i32_0 = arith.constant 0 : i32
    return %arg1, %c0_i32 : i32, i32
  }
  func.func @transform_4(%arg0: i32, %arg1: i32) -> (i32, i32) {
    %c0_i32 = arith.constant 0 : i32
    %c0_i32_0 = arith.constant 0 : i32
    %c0_i32_1 = arith.constant 0 : i32
    return %c0_i32, %c0_i32_0 : i32, i32
  }
  func.func @transform_5(%arg0: i32, %arg1: i32) -> (i32, i32) {
    %c0_i32 = arith.constant 0 : i32
    %c0_i32_0 = arith.constant 0 : i32
    %c0_i32_1 = arith.constant 0 : i32
    return %c0_i32, %c0_i32_0 : i32, i32
  }
  func.func @transform_6(%arg0: i32, %arg1: i32) -> (i32, i32) {
    %c0_i32 = arith.constant 0 : i32
    %c0_i32_0 = arith.constant 0 : i32
    %c0_i32_1 = arith.constant 0 : i32
    return %c0_i32, %c0_i32_0 : i32, i32
  }
  func.func @transform_7(%arg0: i32, %arg1: i32) -> (i32, i32) {
    %c0_i32 = arith.constant 0 : i32
    %c0_i32_0 = arith.constant 0 : i32
    return %arg0, %c0_i32 : i32, i32
  }
}

</mosaic_0001>

<llo_original>
// kernel: tpu_custom_call.1
$region0: #{tpu_custom_call.1}
  #allocation0 [shape = 'u32[]', space=smem, size = 0x4, offset = 0x4, fixed_abs, tag = 'smem constant byte address 0x4 - core index']
  #allocation1 [shape = 'u32[144,128]{1,0:T(1,128)}', space=vmem, size = 0x12000, scoped, tag = 'internal scratch']
  #allocation2 [shape = 'f32[16,128]{1,0:T(8,128)}', space=vmem, size = 0x2000, scoped, tag = 'scratch operand']
  %s0 = inlined_call_operand.hbm [shape: f32[16,128], index: 0, kind: input, shape index: {}]
  %s1 = inlined_call_operand.hbm [shape: f32[128,128], index: 1, kind: input, shape index: {}]
  %s2 = inlined_call_operand.vmem [shape: f32[1,128], index: 2, kind: input, shape index: {}]
  %s3 = inlined_call_operand.hbm [shape: f32[128,128], index: 3, kind: input, shape index: {}]
  %s4 = inlined_call_operand.vmem [shape: f32[1,128], index: 4, kind: input, shape index: {}]
  %s5 = inlined_call_operand.vmem [shape: f32[1,128], index: 5, kind: input, shape index: {}]
  %s6 = inlined_call_operand.vmem [shape: f32[1,128], index: 6, kind: input, shape index: {}]
  %s7 = inlined_call_operand.hbm [shape: f32[16,128], index: 7, kind: output, shape index: {}]
  %s8 = sld [smem:[#allocation0]]
  $region58: #{tpu_custom_call.1} parent=0
    _
  %s10 = ssub.s32 1, %s8
  %s11 = scalar_select 0, %s10, %s8
  $region1: #{tpu_custom_call.1} parent=0
    #allocation3 [shape = 'u8[8192]{0}', space=vmem, size = 0x2000, scoped, tag = 'input window, operand 0, single buffered']
    #allocation4 [shape = 's32[1]{0}', space=sflag, size = 0x4, scoped, tag = 'scoped memory for tpu_custom_call.1']
    #allocation5 [shape = 's32[1]{0}', space=sflag, size = 0x4, scoped, tag = 'scoped memory for tpu_custom_call.1']
    #allocation6 [shape = 'u8[65536]{0}', space=vmem, size = 0x10000, scoped, tag = 'input window, operand 1, single buffered']
    #allocation7 [shape = 's32[1]{0}', space=sflag, size = 0x4, scoped, tag = 'scoped memory for tpu_custom_call.1']
    #allocation8 [shape = 'u8[65536]{0}', space=vmem, size = 0x10000, scoped, tag = 'input window, operand 3, single buffered']
    #allocation9 [shape = 'u8[8192]{0}', space=vmem, size = 0x2000, scoped, tag = 'output window, operand 0, single buffered']
    %12 = vsyncpa [#allocation4], 0
    %13 = vsyncpa [#allocation7], 0
    %14 = vsyncpa [#allocation5], 0
    // Predicated region
    $region2: #{tpu_custom_call.1} parent=1 // pred_check
      _
    $region3: #{tpu_custom_call.1} parent=1 // pred_check_branch
      %16 = sbr.rel (0) target = $region5
    $region4: #{tpu_custom_call.1} parent=1 // pred_region
      %s18 = ssub.s32 256, 256
      %19 = vsyncadd [#allocation4], %s18
      %s20 = sshll.u32 [#allocation3], 4
      %s21 = int_to_ptr.vmem [resolvable:$true] %s20
      %26 = dma.hbm_to_vmem [thread:$0]  %s0, 256, %s21, [#allocation4], 128, 128, 8
    $region5: #{tpu_custom_call.1} parent=1 // pred_fallthru
      _
    // Predicated region
    $region6: #{tpu_custom_call.1} parent=1 // pred_check
      _
    $region7: #{tpu_custom_call.1} parent=1 // pred_check_branch
      %28 = sbr.rel (0) target = $region9
    $region8: #{tpu_custom_call.1} parent=1 // pred_region
      %s30 = ssub.s32 2048, 2048
      %31 = vsyncadd [#allocation7], %s30
      %s32 = sshll.u32 [#allocation6], 4
      %s33 = int_to_ptr.vmem [resolvable:$true] %s32
      %38 = dma.hbm_to_vmem [thread:$0]  %s1, 2048, %s33, [#allocation7], 128, 128, 8
    $region9: #{tpu_custom_call.1} parent=1 // pred_fallthru
      _
    // Predicated region
    $region10: #{tpu_custom_call.1} parent=1 // pred_check
      _
    $region11: #{tpu_custom_call.1} parent=1 // pred_check_branch
      %40 = sbr.rel (0) target = $region13
    $region12: #{tpu_custom_call.1} parent=1 // pred_region
      _
    $region13: #{tpu_custom_call.1} parent=1 // pred_fallthru
      _
    // Predicated region
    $region14: #{tpu_custom_call.1} parent=1 // pred_check
      _
    $region15: #{tpu_custom_call.1} parent=1 // pred_check_branch
      %42 = sbr.rel (0) target = $region17
    $region16: #{tpu_custom_call.1} parent=1 // pred_region
      %s44 = ssub.s32 2048, 2048
      %45 = vsyncadd [#allocation7], %s44
      %s46 = sshll.u32 [#allocation8], 4
      %s47 = int_to_ptr.vmem [resolvable:$true] %s46
      %52 = dma.hbm_to_vmem [thread:$0]  %s3, 2048, %s47, [#allocation7], 128, 128, 8
    $region17: #{tpu_custom_call.1} parent=1 // pred_fallthru
      _
    // Predicated region
    $region18: #{tpu_custom_call.1} parent=1 // pred_check
      _
    $region19: #{tpu_custom_call.1} parent=1 // pred_check_branch
      %54 = sbr.rel (0) target = $region21
    $region20: #{tpu_custom_call.1} parent=1 // pred_region
      _
    $region21: #{tpu_custom_call.1} parent=1 // pred_fallthru
      _
    // Predicated region
    $region22: #{tpu_custom_call.1} parent=1 // pred_check
      _
    $region23: #{tpu_custom_call.1} parent=1 // pred_check_branch
      %56 = sbr.rel (0) target = $region25
    $region24: #{tpu_custom_call.1} parent=1 // pred_region
      _
    $region25: #{tpu_custom_call.1} parent=1 // pred_fallthru
      _
    // Predicated region
    $region26: #{tpu_custom_call.1} parent=1 // pred_check
      _
    $region27: #{tpu_custom_call.1} parent=1 // pred_check_branch
      %58 = sbr.rel (0) target = $region29
    $region28: #{tpu_custom_call.1} parent=1 // pred_region
      _
    $region29: #{tpu_custom_call.1} parent=1 // pred_fallthru
      _
    // Predicated region
    $region30: #{tpu_custom_call.1} parent=1 // pred_check
      _
    $region31: #{tpu_custom_call.1} parent=1 // pred_check_branch
      %60 = sbr.rel (0) target = $region33
    $region32: #{tpu_custom_call.1} parent=1 // pred_region
      %61 = dma.done [#allocation4], 256
    $region33: #{tpu_custom_call.1} parent=1 // pred_fallthru
      _
    // Predicated region
    $region34: #{tpu_custom_call.1} parent=1 // pred_check
      _
    $region35: #{tpu_custom_call.1} parent=1 // pred_check_branch
      %63 = sbr.rel (0) target = $region37
    $region36: #{tpu_custom_call.1} parent=1 // pred_region
      %64 = dma.done [#allocation7], 2048
    $region37: #{tpu_custom_call.1} parent=1 // pred_fallthru
      _
    // Predicated region
    $region38: #{tpu_custom_call.1} parent=1 // pred_check
      _
    $region39: #{tpu_custom_call.1} parent=1 // pred_check_branch
      %66 = sbr.rel (0) target = $region41
    $region40: #{tpu_custom_call.1} parent=1 // pred_region
      %67 = dma.done [#allocation7], 2048
    $region41: #{tpu_custom_call.1} parent=1 // pred_fallthru
      _
    %p68 = scmp.eq.s32.totalorder 0, 0
    // Predicated region
    $region42: #{tpu_custom_call.1} parent=1 // pred_check
      %p69 = pneg %p68
    $region43: #{tpu_custom_call.1} parent=1 // pred_check_branch
      %71 = sbr.rel (%p69) target = $region45
    $region44: #{tpu_custom_call.1} parent=1 // pred_region
      %72 = vst [vmem:[#allocation2] sm:$0xff] 0.0
      %73 = vst [vmem:[#allocation2 + $0x8] sm:$0xff] 0.0
    $region45: #{tpu_custom_call.1} parent=1 // pred_fallthru
      _
    %v74 = vld [vmem:[#allocation3] sm:$0xff]
    %v75 = vld [vmem:[#allocation3 + $0x8] sm:$0xff]
    %v76 = vld [vmem:[#allocation6] sm:$0xff]
    %v77 = vld [vmem:[#allocation6 + $0x8] sm:$0xff]
    %v78 = vld [vmem:[#allocation6 + $0x10] sm:$0xff]
    %v79 = vld [vmem:[#allocation6 + $0x18] sm:$0xff]
    %v80 = vld [vmem:[#allocation6 + $0x20] sm:$0xff]
    %v81 = vld [vmem:[#allocation6 + $0x28] sm:$0xff]
    %v82 = vld [vmem:[#allocation6 + $0x30] sm:$0xff]
    %v83 = vld [vmem:[#allocation6 + $0x38] sm:$0xff]
    %v84 = vld [vmem:[#allocation6 + $0x40] sm:$0xff]
    %v85 = vld [vmem:[#allocation6 + $0x48] sm:$0xff]
    %v86 = vld [vmem:[#allocation6 + $0x50] sm:$0xff]
    %v87 = vld [vmem:[#allocation6 + $0x58] sm:$0xff]
    %v88 = vld [vmem:[#allocation6 + $0x60] sm:$0xff]
    %v89 = vld [vmem:[#allocation6 + $0x68] sm:$0xff]
    %v90 = vld [vmem:[#allocation6 + $0x70] sm:$0xff]
    %v91 = vld [vmem:[#allocation6 + $0x78] sm:$0xff]
    %v92 = vld [vmem:[%s2] sm:$0x1]
    %v94 = vlaneseq
    %v95 = vshrl.u32 %v94, 7
    %v96 = vsub.s32 0, %v95
    %v97 = vrot.slane %v92, %v96
    %99 = vmatprep.subr.mxu0 0.0
    %100 = vmatpush1.msra.mxu0 %v76
    %101 = vmatprep.subr.mxu0 0.0
    %102 = vmatpush1.msra.mxu0 %v77
    %103 = vmatprep.subr.mxu0 0.0
    %104 = vmatpush1.msra.mxu0 %v78
    %105 = vmatprep.subr.mxu0 0.0
    %106 = vmatpush1.msra.mxu0 %v79
    %107 = vmatprep.subr.mxu0 0.0
    %108 = vmatpush1.msra.mxu0 %v80
    %109 = vmatprep.subr.mxu0 0.0
    %110 = vmatpush1.msra.mxu0 %v81
    %111 = vmatprep.subr.mxu0 0.0
    %112 = vmatpush1.msra.mxu0 %v82
    %113 = vmatprep.subr.mxu0 0.0
    %114 = vmatpush1.msra.mxu0 %v83
    %115 = vmatprep.subr.mxu0 0.0
    %116 = vmatpush1.msra.mxu0 %v84
    %117 = vmatprep.subr.mxu0 0.0
    %118 = vmatpush1.msra.mxu0 %v85
    %119 = vmatprep.subr.mxu0 0.0
    %120 = vmatpush1.msra.mxu0 %v86
    %121 = vmatprep.subr.mxu0 0.0
    %122 = vmatpush1.msra.mxu0 %v87
    %123 = vmatprep.subr.mxu0 0.0
    %124 = vmatpush1.msra.mxu0 %v88
    %125 = vmatprep.subr.mxu0 0.0
    %126 = vmatpush1.msra.mxu0 %v89
    %127 = vmatprep.subr.mxu0 0.0
    %128 = vmatpush1.msra.mxu0 %v90
    %129 = vmatprep.subr.mxu0 0.0
    %130 = vmatpush1.msra.mxu0 %v91
    %131 = vmatprep.subr.mxu0 0.0
    %132 = vmatpush1.msra.mxu0 0.0
    %133 = vmatprep.subr.mxu0 0.0
    %134 = vmatpush1.msra.mxu0 0.0
    %135 = vmatprep.subr.mxu0 0.0
    %136 = vmatpush1.msra.mxu0 0.0
    %137 = vmatprep.subr.mxu0 0.0
    %138 = vmatpush1.msra.mxu0 0.0
    %139 = vmatprep.subr.mxu0 0.0
    %140 = vmatpush1.msra.mxu0 0.0
    %141 = vmatprep.subr.mxu0 0.0
    %142 = vmatpush1.msra.mxu0 0.0
    %143 = vmatprep.subr.mxu0 0.0
    %144 = vmatpush1.msra.mxu0 0.0
    %145 = vmatprep.subr.mxu0 0.0
    %146 = vmatpush1.msra.mxu0 0.0
    %147 = vmatprep.subr.mxu0 0.0
    %148 = vmatpush1.msra.mxu0 0.0
    %149 = vmatprep.subr.mxu0 0.0
    %150 = vmatpush1.msra.mxu0 0.0
    %151 = vmatprep.subr.mxu0 0.0
    %152 = vmatpush1.msra.mxu0 0.0
    %153 = vmatprep.subr.mxu0 0.0
    %154 = vmatpush1.msra.mxu0 0.0
    %155 = vmatprep.subr.mxu0 0.0
    %156 = vmatpush1.msra.mxu0 0.0
    %157 = vmatprep.subr.mxu0 0.0
    %158 = vmatpush1.msra.mxu0 0.0
    %159 = vmatprep.subr.mxu0 0.0
    %160 = vmatpush1.msra.mxu0 0.0
    %161 = vmatprep.subr.mxu0 0.0
    %162 = vmatpush1.msra.mxu0 0.0
    %163 = vmatprep.mubr.f32.mxu0 0.0
    %164 = vmatmul.mubr.f32.gmra.mrb[0].mxu0 %v74
    %v165 = vpop.f32.mrb[0].mxu0
    %v166 = vadd.f32 %v97, %v165
    %v167 = vpop.f32.mrb[0].mxu0
    %168 = vmatprep.mubr.f32.mxu0 0.0
    %169 = vmatmul.mubr.f32.gmra.mrb[0].mxu0 %v75
    %v170 = vpop.f32.mrb[0].mxu0
    %v171 = vadd.f32 %v97, %v170
    %v172 = vpop.f32.mrb[0].mxu0
    %173 = vdwg.mxu0
    %v174 = vmax.f32 %v166, 0.0
    %v175 = vmax.f32 %v171, 0.0
    %v176 = vld [vmem:[#allocation2] sm:$0xff]
    %v177 = vld [vmem:[#allocation2 + $0x8] sm:$0xff]
    %v178 = vld [vmem:[#allocation8] sm:$0xff]
    %v179 = vld [vmem:[#allocation8 + $0x8] sm:$0xff]
    %v180 = vld [vmem:[#allocation8 + $0x10] sm:$0xff]
    %v181 = vld [vmem:[#allocation8 + $0x18] sm:$0xff]
    %v182 = vld [vmem:[#allocation8 + $0x20] sm:$0xff]
    %v183 = vld [vmem:[#allocation8 + $0x28] sm:$0xff]
    %v184 = vld [vmem:[#allocation8 + $0x30] sm:$0xff]
    %v185 = vld [vmem:[#allocation8 + $0x38] sm:$0xff]
    %v186 = vld [vmem:[#allocation8 + $0x40] sm:$0xff]
    %v187 = vld [vmem:[#allocation8 + $0x48] sm:$0xff]
    %v188 = vld [vmem:[#allocation8 + $0x50] sm:$0xff]
    %v189 = vld [vmem:[#allocation8 + $0x58] sm:$0xff]
    %v190 = vld [vmem:[#allocation8 + $0x60] sm:$0xff]
    %v191 = vld [vmem:[#allocation8 + $0x68] sm:$0xff]
    %v192 = vld [vmem:[#allocation8 + $0x70] sm:$0xff]
    %v193 = vld [vmem:[#allocation8 + $0x78] sm:$0xff]
    %194 = vmatprep.subr.mxu0 0.0
    %195 = vmatpush1.msra.mxu0 %v178
    %196 = vmatprep.subr.mxu0 0.0
    %197 = vmatpush1.msra.mxu0 %v179
    %198 = vmatprep.subr.mxu0 0.0
    %199 = vmatpush1.msra.mxu0 %v180
    %200 = vmatprep.subr.mxu0 0.0
    %201 = vmatpush1.msra.mxu0 %v181
    %202 = vmatprep.subr.mxu0 0.0
    %203 = vmatpush1.msra.mxu0 %v182
    %204 = vmatprep.subr.mxu0 0.0
    %205 = vmatpush1.msra.mxu0 %v183
    %206 = vmatprep.subr.mxu0 0.0
    %207 = vmatpush1.msra.mxu0 %v184
    %208 = vmatprep.subr.mxu0 0.0
    %209 = vmatpush1.msra.mxu0 %v185
    %210 = vmatprep.subr.mxu0 0.0
    %211 = vmatpush1.msra.mxu0 %v186
    %212 = vmatprep.subr.mxu0 0.0
    %213 = vmatpush1.msra.mxu0 %v187
    %214 = vmatprep.subr.mxu0 0.0
    %215 = vmatpush1.msra.mxu0 %v188
    %216 = vmatprep.subr.mxu0 0.0
    %217 = vmatpush1.msra.mxu0 %v189
    %218 = vmatprep.subr.mxu0 0.0
    %219 = vmatpush1.msra.mxu0 %v190
    %220 = vmatprep.subr.mxu0 0.0
    %221 = vmatpush1.msra.mxu0 %v191
    %222 = vmatprep.subr.mxu0 0.0
    %223 = vmatpush1.msra.mxu0 %v192
    %224 = vmatprep.subr.mxu0 0.0
    %225 = vmatpush1.msra.mxu0 %v193
    %226 = vmatprep.subr.mxu0 0.0
    %227 = vmatpush1.msra.mxu0 0.0
    %228 = vmatprep.subr.mxu0 0.0
    %229 = vmatpush1.msra.mxu0 0.0
    %230 = vmatprep.subr.mxu0 0.0
    %231 = vmatpush1.msra.mxu0 0.0
    %232 = vmatprep.subr.mxu0 0.0
    %233 = vmatpush1.msra.mxu0 0.0
    %234 = vmatprep.subr.mxu0 0.0
    %235 = vmatpush1.msra.mxu0 0.0
    %236 = vmatprep.subr.mxu0 0.0
    %237 = vmatpush1.msra.mxu0 0.0
    %238 = vmatprep.subr.mxu0 0.0
    %239 = vmatpush1.msra.mxu0 0.0
    %240 = vmatprep.subr.mxu0 0.0
    %241 = vmatpush1.msra.mxu0 0.0
    %242 = vmatprep.subr.mxu0 0.0
    %243 = vmatpush1.msra.mxu0 0.0
    %244 = vmatprep.subr.mxu0 0.0
    %245 = vmatpush1.msra.mxu0 0.0
    %246 = vmatprep.subr.mxu0 0.0
    %247 = vmatpush1.msra.mxu0 0.0
    %248 = vmatprep.subr.mxu0 0.0
    %249 = vmatpush1.msra.mxu0 0.0
    %250 = vmatprep.subr.mxu0 0.0
    %251 = vmatpush1.msra.mxu0 0.0
    %252 = vmatprep.subr.mxu0 0.0
    %253 = vmatpush1.msra.mxu0 0.0
    %254 = vmatprep.subr.mxu0 0.0
    %255 = vmatpush1.msra.mxu0 0.0
    %256 = vmatprep.subr.mxu0 0.0
    %257 = vmatpush1.msra.mxu0 0.0
    %258 = vmatprep.mubr.f32.mxu0 0.0
    %259 = vmatmul.mubr.f32.gmra.mrb[0].mxu0 %v174
    %v260 = vpop.f32.mrb[0].mxu0
    %v261 = vadd.f32 0.0, %v260
    %v262 = vpop.f32.mrb[0].mxu0
    %263 = vmatprep.mubr.f32.mxu0 0.0
    %264 = vmatmul.mubr.f32.gmra.mrb[0].mxu0 %v175
    %v265 = vpop.f32.mrb[0].mxu0
    %v266 = vadd.f32 0.0, %v265
    %v267 = vpop.f32.mrb[0].mxu0
    %268 = vdwg.mxu0
    %v269 = vadd.f32 %v176, %v261
    %v270 = vadd.f32 %v177, %v266
    %271 = vst [vmem:[#allocation2] sm:$0xff] %v269
    %272 = vst [vmem:[#allocation2 + $0x8] sm:$0xff] %v270
    // Predicated region
    $region46: #{tpu_custom_call.1} parent=1 // pred_check
      %p273 = pneg %p68
    $region47: #{tpu_custom_call.1} parent=1 // pred_check_branch
      %275 = sbr.rel (%p273) target = $region49
    $region48: #{tpu_custom_call.1} parent=1 // pred_region
      %v276 = vld [vmem:[#allocation3] sm:$0xff]
      %v277 = vld [vmem:[#allocation3 + $0x8] sm:$0xff]
      %v278 = vld [vmem:[#allocation2] sm:$0xff]
      %v279 = vld [vmem:[#allocation2 + $0x8] sm:$0xff]
      %v280 = vadd.f32 %v276, %v278
      %v281 = vadd.f32 %v277, %v279
      %v282 = vld [vmem:[%s4] sm:$0x1]
      %v284 = vlaneseq
      %v285 = vshrl.u32 %v284, 7
      %v286 = vsub.s32 0, %v285
      %v287 = vrot.slane %v282, %v286
      %v289 = vadd.f32 %v280, %v287
      %v290 = vadd.f32 %v281, %v287
      %291 = vadd.xlane.f32.xlu0 %v289
      %v292 = vpop.xlane.xlu0 %291
      %293 = vadd.xlane.f32.xlu0 %v290
      %v294 = vpop.xlane.xlu0 %293
      %v295 = vmul.f32 %v292, 0.03125
      %v296 = vmul.f32 %v294, 0.03125
      %v297 = vsub.f32 %v289, %v295
      %v298 = vsub.f32 %v290, %v296
      %v299 = vlaneseq
      %v300 = vand.u32 %v299, 127
      %vm301 = vcmp.lt.s32.totalorder %v300, 32
      %v302 = vsel %vm301, %v297, 0.0
      %v303 = vsel %vm301, %v298, 0.0
      %v304 = vmul.f32 %v302, %v302
      %v305 = vmul.f32 %v303, %v303
      %306 = vadd.xlane.f32.xlu0 %v304
      %v307 = vpop.xlane.xlu0 %306
      %308 = vadd.xlane.f32.xlu0 %v305
      %v309 = vpop.xlane.xlu0 %308
      %v310 = vmul.f32 %v307, 0.03125
      %v311 = vmul.f32 %v309, 0.03125
      %v312 = vadd.f32 %v310, 1e-05
      %v313 = vadd.f32 %v311, 1e-05
      %v314 = vrsqrt.pop %v312
      %v315 = vrsqrt.pop %v313
      %v316 = vmul.f32 %v297, %v314
      %v317 = vmul.f32 %v298, %v315
      %v318 = vld [vmem:[%s5] sm:$0x1]
      %v320 = vlaneseq
      %v321 = vshrl.u32 %v320, 7
      %v322 = vsub.s32 0, %v321
      %v323 = vrot.slane %v318, %v322
      %v325 = vmul.f32 %v316, %v323
      %v326 = vmul.f32 %v317, %v323
      %v327 = vld [vmem:[%s6] sm:$0x1]
      %v329 = vlaneseq
      %v330 = vshrl.u32 %v329, 7
      %v331 = vsub.s32 0, %v330
      %v332 = vrot.slane %v327, %v331
      %v334 = vadd.f32 %v325, %v332
      %v335 = vadd.f32 %v326, %v332
      %336 = vst [vmem:[#allocation9] sm:$0xff] %v334
      %337 = vst [vmem:[#allocation9 + $0x8] sm:$0xff] %v335
    $region49: #{tpu_custom_call.1} parent=1 // pred_fallthru
      _
    // Predicated region
    $region50: #{tpu_custom_call.1} parent=1 // pred_check
      _
    $region51: #{tpu_custom_call.1} parent=1 // pred_check_branch
      %339 = sbr.rel (0) target = $region53
    $region52: #{tpu_custom_call.1} parent=1 // pred_region
      %s341 = ssub.s32 256, 256
      %342 = vsyncadd [#allocation5], %s341
      %s343 = sshll.u32 [#allocation9], 4
      %s344 = int_to_ptr.vmem [resolvable:$true] %s343
      %349 = dma.vmem_to_hbm [thread:$0]  %s344, 256, %s7, [#allocation5], 128, 128, 8
    $region53: #{tpu_custom_call.1} parent=1 // pred_fallthru
      _
    // Predicated region
    $region54: #{tpu_custom_call.1} parent=1 // pred_check
      _
    $region55: #{tpu_custom_call.1} parent=1 // pred_check_branch
      %351 = sbr.rel (0) target = $region57
    $region56: #{tpu_custom_call.1} parent=1 // pred_region
      %352 = dma.done [#allocation5], 256
    $region57: #{tpu_custom_call.1} parent=1 // pred_fallthru
      _
    %353 = vsyncpa [#allocation4], 1
    %354 = vsyncpa [#allocation7], 1
    %355 = vsyncpa [#allocation5], 1

</llo_original>
